<compile_context>
chip_gen: v7x
topology: tpu7x:2x2x1
jax: 0.10.0
libtpu: 0.0.40
codegen_flags: <defaults>
</compile_context>

<pallas_src>
import functools

import jax
import jax.numpy as jnp
from jax.experimental import pallas as pl
from jax.experimental.pallas import tpu as pltpu

_LANE = 512                    # lane-dense slab width (multiple of 128)
_TARGET_BLOCK_BYTES = 2 << 20  # 2 MiB / operand / block: 3 ops x 2 buffers =
                               # 12 MiB -> fits v5e's 16 MiB scoped-VMEM default
                               # and sits at the measured roofline knee.
_SMALL_N = 1 << 16             # below this, plain jnp beats kernel dispatch


def _huber_kernel(yt_ref, yp_ref, out_ref, *, delta):
    # Upcast in-vreg; HBM traffic stays in the input dtype.
    yt = yt_ref[...].astype(jnp.float32)
    yp = yp_ref[...].astype(jnp.float32)
    diff = yt - yp
    adiff = jnp.abs(diff)
    quad = 0.5 * diff * diff
    # Matches the reference module verbatim: delta * (|d| - 0.5 * delta**2).
    lin = delta * (adiff - 0.5 * (delta * delta))
    out_ref[...] = jnp.where(adiff <= delta, quad, lin).astype(out_ref.dtype)


def _huber_formula(yt, yp, delta, out_dtype):
    """Same math as the kernel, for the small-n fast path / ragged tail / ref."""
    yt = yt.astype(jnp.float32)
    yp = yp.astype(jnp.float32)
    diff = yt - yp
    adiff = jnp.abs(diff)
    return jnp.where(adiff <= delta, 0.5 * diff * diff,
                     delta * (adiff - 0.5 * (delta * delta))).astype(out_dtype)


def _round_up(x, m):
    return ((x + m - 1) // m) * m


def _round_down(x, m):
    return (x // m) * m


def huber_loss(y_test, y_pred, delta=1.0, *, min_pallas_elements=_SMALL_N):
    """Elementwise Huber loss, same semantics as the PyTorch module's forward."""
    assert y_test.shape == y_pred.shape
    orig_shape = y_test.shape
    dtype = jnp.promote_types(y_test.dtype, y_pred.dtype)  # no forced f32 promo
    delta = float(delta)

    yt = y_test.astype(dtype).reshape(-1)
    yp = y_pred.astype(dtype).reshape(-1)
    n = yt.shape[0]

    itemsize = jnp.dtype(dtype).itemsize
    sublane = max(8, 32 // itemsize)      # packed sublanes: 8 f32, 16 bf16, 32 i8
    tile_elems = sublane * _LANE          # minimal unmasked-tile granularity

    # Small-problem fast path: dispatch + layout cost dominates and XLA fuses
    # the elementwise expression anyway.
    if n < max(min_pallas_elements, tile_elems):
        return _huber_formula(yt, yp, delta, dtype).reshape(orig_shape)

    # Tile-aligned bulk handled by the kernel; ragged tail (< tile_elems) by jnp.
    bulk = _round_down(n, tile_elems)
    bulk_rows = bulk // _LANE

    # Block rows targeted in bytes (dtype-aware), rounded to packed sublanes.
    block_rows = _round_down(_TARGET_BLOCK_BYTES // (_LANE * itemsize), sublane)
    block_rows = max(block_rows, sublane)
    if bulk_rows <= 2 * block_rows:
        # Guarantee >= 2 grid steps where possible so the 'parallel' axis can
        # shard across both v7x TensorCores instead of idling one.
        block_rows = max(sublane, _round_up(pl.cdiv(bulk_rows, 2), sublane))
    grid = (pl.cdiv(bulk_rows, block_rows),)

    yt2 = (yt if bulk == n else yt[:bulk]).reshape(bulk_rows, _LANE)
    yp2 = (yp if bulk == n else yp[:bulk]).reshape(bulk_rows, _LANE)

    kernel = functools.partial(_huber_kernel, delta=delta)
    out_bulk = pl.pallas_call(
        kernel,
        out_shape=jax.ShapeDtypeStruct((bulk_rows, _LANE), dtype),
        grid_spec=pl.GridSpec(
            grid=grid,
            in_specs=[
                pl.BlockSpec((block_rows, _LANE), lambda i: (i, 0)),
                pl.BlockSpec((block_rows, _LANE), lambda i: (i, 0)),
            ],
            out_specs=pl.BlockSpec((block_rows, _LANE), lambda i: (i, 0)),
        ),
        compiler_params=pltpu.CompilerParams(
            dimension_semantics=("parallel",),   # megacore-shard on v7x
        ),
        cost_estimate=pl.CostEstimate(
            flops=6 * bulk,
            transcendentals=0,
            bytes_accessed=3 * bulk * itemsize,
        ),
    )(yt2, yp2)

    out = out_bulk.reshape(-1)
    if bulk != n:
        tail = _huber_formula(yt[bulk:], yp[bulk:], delta, dtype)
        out = jnp.concatenate([out, tail])
    return out.reshape(orig_shape)


if __name__ == "__main__":
    # 1) The module's example tensors (tiny -> jnp fast path, same formula).
    y_pred = jnp.array([2.5, 0.0, 2.1, 7.8], dtype=jnp.float32)
    y_test = jnp.array([3.0, -0.5, 2.0, 7.0], dtype=jnp.float32)
    out = huber_loss(y_test, y_pred, delta=1.0)
    jax.block_until_ready(out)
    ref = _huber_formula(y_test, y_pred, 1.0, jnp.float32)
    assert jnp.allclose(out, ref, atol=1e-6), (out, ref)

    key = jax.random.PRNGKey(0)
    k1, k2, k3, k4 = jax.random.split(key, 4)

    # 2) Small random case (seq=8, hidden=32) -> fast path.
    a = jax.random.normal(k1, (8, 32), dtype=jnp.float32)
    b = jax.random.normal(k2, (8, 32), dtype=jnp.float32)
    out2 = huber_loss(a, b, delta=1.5)
    jax.block_until_ready(out2)
    assert jnp.allclose(out2, _huber_formula(a, b, 1.5, jnp.float32), atol=1e-6)

    # 3) Exercise the Pallas kernel (bypass the small-n fast path):
    #    16x512 f32 -> exact tile multiple (zero-copy), 2 grid steps of (8,512).
    c = jax.random.normal(k3, (16, 512), dtype=jnp.float32)
    d = jax.random.normal(k4, (16, 512), dtype=jnp.float32)
    out3 = huber_loss(c, d, delta=1.0, min_pallas_elements=0)
    jax.block_until_ready(out3)
    assert jnp.allclose(out3, _huber_formula(c, d, 1.0, jnp.float32), atol=1e-6)

    # 4) Ragged size: Pallas on the aligned bulk, jnp on the < 1-tile tail.
    e = jax.random.normal(k1, (16, 500), dtype=jnp.float32)
    f = jax.random.normal(k2, (16, 500), dtype=jnp.float32)
    out4 = huber_loss(e, f, delta=1.0, min_pallas_elements=0)
    jax.block_until_ready(out4)
    assert jnp.allclose(out4, _huber_formula(e, f, 1.0, jnp.float32), atol=1e-6)

    # 5) bf16: dtype-aware sublane (16-row blocks), 2 grid steps of (16,512).
    g = jax.random.normal(k3, (32, 512), dtype=jnp.bfloat16)
    h = jax.random.normal(k4, (32, 512), dtype=jnp.bfloat16)
    out5 = huber_loss(g, h, delta=1.0, min_pallas_elements=0)
    jax.block_until_ready(out5)
    assert jnp.allclose(out5.astype(jnp.float32),
                        _huber_formula(g, h, 1.0, jnp.bfloat16).astype(jnp.float32),
                        atol=1e-2)

    print("KERNEL_OK")
</pallas_src>

<mosaic_0001>
module attributes {stable_mosaic.version = 11 : i64} {
  func.func @_huber_kernel(%arg0: i32, %arg1: memref<8x512xf32, #tpu.memory_space<vmem>>, %arg2: memref<8x512xf32, #tpu.memory_space<vmem>>, %arg3: memref<8x512xf32, #tpu.memory_space<vmem>>) attributes {dimension_semantics = [#tpu.dimension_semantics<parallel>], iteration_bounds = array<i64: 2>, scalar_prefetch = 0 : i64, scratch_operands = 0 : i64, tpu.core_type = #tpu.core_type<tc>, window_params = [{transform_indices = @transform_0, window_bounds = array<i64: 8, 512>}, {transform_indices = @transform_1, window_bounds = array<i64: 8, 512>}, {transform_indices = @transform_2, window_bounds = array<i64: 8, 512>}]} {
    %c0 = arith.constant 0 : index
    %c0_0 = arith.constant 0 : index
    %0 = vector.load %arg1[%c0, %c0_0] : memref<8x512xf32, #tpu.memory_space<vmem>>, vector<8x512xf32>
    %c0_1 = arith.constant 0 : index
    %c0_2 = arith.constant 0 : index
    %1 = vector.load %arg2[%c0_1, %c0_2] : memref<8x512xf32, #tpu.memory_space<vmem>>, vector<8x512xf32>
    %2 = arith.subf %0, %1 : vector<8x512xf32>
    %3 = math.absf %2 : vector<8x512xf32>
    %cst = arith.constant 5.000000e-01 : f32
    %4 = vector.broadcast %cst : f32 to vector<8x512xf32>
    %5 = arith.mulf %4, %2 : vector<8x512xf32>
    %6 = arith.mulf %5, %2 : vector<8x512xf32>
    %cst_3 = arith.constant 5.000000e-01 : f32
    %7 = vector.broadcast %cst_3 : f32 to vector<8x512xf32>
    %8 = arith.subf %3, %7 : vector<8x512xf32>
    %cst_4 = arith.constant 1.000000e+00 : f32
    %9 = vector.broadcast %cst_4 : f32 to vector<8x512xf32>
    %10 = arith.mulf %9, %8 : vector<8x512xf32>
    %cst_5 = arith.constant 1.000000e+00 : f32
    %11 = vector.broadcast %cst_5 : f32 to vector<8x512xf32>
    %12 = arith.cmpf ole, %3, %11 : vector<8x512xf32>
    %13 = arith.select %12, %6, %10 : vector<8x512xi1>, vector<8x512xf32>
    %c0_6 = arith.constant 0 : index
    %c0_7 = arith.constant 0 : index
    %14 = vector.load %arg3[%c0_6, %c0_7] : memref<8x512xf32, #tpu.memory_space<vmem>>, vector<8x512xf32>
    tpu.vector_store %arg3[%c0_6, %c0_7], %13 {strides = array<i32>} : memref<8x512xf32, #tpu.memory_space<vmem>>, vector<8x512xf32>,
    return
  }
  func.func @transform_0(%arg0: i32) -> (i32, i32) {
    %c0_i32 = arith.constant 0 : i32
    %c0_i32_0 = arith.constant 0 : i32
    return %arg0, %c0_i32 : i32, i32
  }
  func.func @transform_1(%arg0: i32) -> (i32, i32) {
    %c0_i32 = arith.constant 0 : i32
    %c0_i32_0 = arith.constant 0 : i32
    return %arg0, %c0_i32 : i32, i32
  }
  func.func @transform_2(%arg0: i32) -> (i32, i32) {
    %c0_i32 = arith.constant 0 : i32
    %c0_i32_0 = arith.constant 0 : i32
    return %arg0, %c0_i32 : i32, i32
  }
}

</mosaic_0001>

<llo_original>
// kernel: tpu_custom_call.1
$region0: #{tpu_custom_call.1}
  #allocation0 [shape = 'u32[]', space=smem, size = 0x4, offset = 0x4, fixed_abs, tag = 'smem constant byte address 0x4 - core index']
  #allocation1 [shape = 'u32[144,128]{1,0:T(1,128)}', space=vmem, size = 0x12000, scoped, tag = 'internal scratch']
  %s0 = inlined_call_operand.hbm [shape: f32[16,512], index: 0, kind: input, shape index: {}]
  %s1 = inlined_call_operand.hbm [shape: f32[16,512], index: 1, kind: input, shape index: {}]
  %s2 = inlined_call_operand.hbm [shape: f32[16,512], index: 2, kind: output, shape index: {}]
  %s3 = sld [smem:[#allocation0]]
  $region49: #{tpu_custom_call.1} parent=0
    _
  %s5 = ssub.s32 1, %s3
  %s6 = scalar_select 0, %s5, %s3
  $region1: #{tpu_custom_call.1} parent=0
    #allocation2 [shape = 'u8[32768]{0}', space=vmem, size = 0x8000, scoped, tag = 'input window, operand 0']
    #allocation3 [shape = 's32[2]{0}', space=sflag, size = 0x8, scoped, tag = 'scoped memory for tpu_custom_call.1']
    #allocation4 [shape = 's32[2]{0}', space=sflag, size = 0x8, scoped, tag = 'scoped memory for tpu_custom_call.1']
    #allocation5 [shape = 'u8[32768]{0}', space=vmem, size = 0x8000, scoped, tag = 'input window, operand 1']
    #allocation6 [shape = 's32[2]{0}', space=sflag, size = 0x8, scoped, tag = 'scoped memory for tpu_custom_call.1']
    #allocation7 [shape = 'u8[32768]{0}', space=vmem, size = 0x8000, scoped, tag = 'output window, operand 0']
    %7 = vsyncpa [#allocation3], 0
    %s8 = scalar_lea.sflag [#allocation3], 1
    %9 = vsyncpa %s8, 0
    %10 = vsyncpa [#allocation6], 0
    %s11 = scalar_lea.sflag [#allocation6], 1
    %12 = vsyncpa %s11, 0
    %13 = vsyncpa [#allocation4], 0
    %s14 = scalar_lea.sflag [#allocation4], 1
    %15 = vsyncpa %s14, 0
    loop: start=0, step=1, limit=4
    $region2: #{tpu_custom_call.1} parent=1 // loop_pre_header
      _
    $region3: #{tpu_custom_call.1} parent=1 // loop_header
      %s17 = sphi 0, %s21
      %p18 = scmp.ge.s32.totalorder %s17, 4
      %s27 = sphi 0, %s29
      %s30 = sphi 0, %s27
      %s31 = sphi 0, %s30
      %s47 = sphi 0, %s31
      %s53 = sphi 0, %s55
      %s56 = sphi 0, %s53
      %s57 = sphi 0, %s56
      %s73 = sphi 0, %s57
      %s79 = sphi 0, %s81
      %s82 = sphi 0, %s79
      %s83 = sphi 0, %s82
      %s99 = sphi 0, %s83
    $region4: #{tpu_custom_call.1} parent=1 // loop_header_branch
      %20 = sbr.rel (%p18) target = $region8
    $region5: #{tpu_custom_call.1} parent=1 // loop_body
      %s22 = ssub.s32 %s17, 1
      %s23 = ssub.s32 %s17, 2
      %s24 = sadd.s32 %s17, 1
      %s25 = ssub.s32 %s17, %s24
      %p26 = scmp.eq.s32.totalorder %s25, 0
      %s28 = sadd.s32 %s27, 1
      %s29 = scalar_select %p26, %s27, %s28
      %p32 = pneg %p26
      %p33 = scmp.eq.s32.totalorder %s17, 1
      %p34 = por %p32, %p33
      %p35 = scmp.ne.s32.totalorder %s27, %s30
      %p36 = scmp.eq.s32.totalorder %s17, 0
      %p37 = por %p35, %p36
      %p38 = scmp.ne.s32.totalorder %s27, %s30
      %p39 = scmp.eq.s32.totalorder %s22, 1
      %p40 = por %p38, %p39
      %p41 = scmp.ne.s32.totalorder %s30, %s31
      %p42 = scmp.eq.s32.totalorder %s22, 0
      %p43 = por %p41, %p42
      %p44 = scmp.ne.s32.totalorder %s30, %s31
      %p45 = scmp.eq.s32.totalorder %s23, 1
      %p46 = por %p44, %p45
      %p48 = scmp.ne.s32.totalorder %s31, %s47
      %p49 = scmp.eq.s32.totalorder %s23, 0
      %p50 = por %p48, %p49
      %s51 = ssub.s32 %s17, %s24
      %p52 = scmp.eq.s32.totalorder %s51, 0
      %s54 = sadd.s32 %s53, 1
      %s55 = scalar_select %p52, %s53, %s54
      %p58 = pneg %p52
      %p59 = scmp.eq.s32.totalorder %s17, 1
      %p60 = por %p58, %p59
      %p61 = scmp.ne.s32.totalorder %s53, %s56
      %p62 = scmp.eq.s32.totalorder %s17, 0
      %p63 = por %p61, %p62
      %p64 = scmp.ne.s32.totalorder %s53, %s56
      %p65 = scmp.eq.s32.totalorder %s22, 1
      %p66 = por %p64, %p65
      %p67 = scmp.ne.s32.totalorder %s56, %s57
      %p68 = scmp.eq.s32.totalorder %s22, 0
      %p69 = por %p67, %p68
      %p70 = scmp.ne.s32.totalorder %s56, %s57
      %p71 = scmp.eq.s32.totalorder %s23, 1
      %p72 = por %p70, %p71
      %p74 = scmp.ne.s32.totalorder %s57, %s73
      %p75 = scmp.eq.s32.totalorder %s23, 0
      %p76 = por %p74, %p75
      %s77 = ssub.s32 %s17, %s24
      %p78 = scmp.eq.s32.totalorder %s77, 0
      %s80 = sadd.s32 %s79, 1
      %s81 = scalar_select %p78, %s79, %s80
      %p84 = pneg %p78
      %p85 = scmp.eq.s32.totalorder %s17, 1
      %p86 = por %p84, %p85
      %p87 = scmp.ne.s32.totalorder %s79, %s82
      %p88 = scmp.eq.s32.totalorder %s17, 0
      %p89 = por %p87, %p88
      %p90 = scmp.ne.s32.totalorder %s79, %s82
      %p91 = scmp.eq.s32.totalorder %s22, 1
      %p92 = por %p90, %p91
      %p93 = scmp.ne.s32.totalorder %s82, %s83
      %p94 = scmp.eq.s32.totalorder %s22, 0
      %p95 = por %p93, %p94
      %p96 = scmp.ne.s32.totalorder %s82, %s83
      %p97 = scmp.eq.s32.totalorder %s23, 1
      %p98 = por %p96, %p97
      %p100 = scmp.ne.s32.totalorder %s83, %s99
      %p101 = scmp.eq.s32.totalorder %s23, 0
      %p102 = por %p100, %p101
      %p103 = scmp.le.s32.totalorder 1, %s17
      %p104 = scmp.lt.s32.totalorder %s17, 3
      %p105 = pnand %p103, %p104
      %p106 = pneg %p105
      // Predicated region
      $region9: #{tpu_custom_call.1} parent=5 // pred_check
        _
      $region10: #{tpu_custom_call.1} parent=5 // pred_check_branch
        %108 = sbr.rel (%p105) target = $region12
      $region11: #{tpu_custom_call.1} parent=5 // pred_region
        %s109 = ssub.s32 %s17, 1
      $region12: #{tpu_custom_call.1} parent=5 // pred_fallthru
        _
      %p110 = scmp.lt.s32.totalorder %s17, 2
      // Predicated region
      $region13: #{tpu_custom_call.1} parent=5 // pred_check
        %p111 = pneg %p110
      $region14: #{tpu_custom_call.1} parent=5 // pred_check_branch
        %113 = sbr.rel (%p111) target = $region16
      $region15: #{tpu_custom_call.1} parent=5 // pred_region
        // Predicated region
        $region17: #{tpu_custom_call.1} parent=15 // pred_check
          %p114 = pneg %p37
        $region18: #{tpu_custom_call.1} parent=15 // pred_check_branch
          %116 = sbr.rel (%p114) target = $region20
        $region19: #{tpu_custom_call.1} parent=15 // pred_region
          %s117 = sand.u32 %s27, 1
          %s118 = scalar_lea.sflag [#allocation3], %s117
          %s119 = sand.u32 %s27, 1
          %s120 = smul.addr %s119, 32
          %s121 = scalar_lea.vmem [#allocation2], %s120
          %s123 = ssub.s32 512, 512
          %124 = vsyncadd %s118, %s123
          %s125 = smul.addr %s17, 4
          %s126 = smul.addr %s125, 128
          %s127 = scalar_lea.hbm %s0, %s126
          %s129 = sshll.u32 %s121, 4
          %s130 = int_to_ptr.vmem [resolvable:$true] %s129
          %132 = dma.hbm_to_vmem [thread:$0]  %s127, 512, %s130, %s118
        $region20: #{tpu_custom_call.1} parent=15 // pred_fallthru
          _
        // Predicated region
        $region21: #{tpu_custom_call.1} parent=15 // pred_check
          %p133 = pneg %p63
        $region22: #{tpu_custom_call.1} parent=15 // pred_check_branch
          %135 = sbr.rel (%p133) target = $region24
        $region23: #{tpu_custom_call.1} parent=15 // pred_region
          %s136 = sand.u32 %s53, 1
          %s137 = scalar_lea.sflag [#allocation6], %s136
          %s138 = sand.u32 %s53, 1
          %s139 = smul.addr %s138, 32
          %s140 = scalar_lea.vmem [#allocation5], %s139
          %s142 = ssub.s32 512, 512
          %143 = vsyncadd %s137, %s142
          %s144 = smul.addr %s17, 4
          %s145 = smul.addr %s144, 128
          %s146 = scalar_lea.hbm %s1, %s145
          %s148 = sshll.u32 %s140, 4
          %s149 = int_to_ptr.vmem [resolvable:$true] %s148
          %151 = dma.hbm_to_vmem [thread:$0]  %s146, 512, %s149, %s137
        $region24: #{tpu_custom_call.1} parent=15 // pred_fallthru
          _
      $region16: #{tpu_custom_call.1} parent=5 // pred_fallthru
        _
      %p152 = scmp.le.s32.totalorder 1, %s17
      %p153 = scmp.lt.s32.totalorder %s17, 3
      %p154 = pnand %p152, %p153
      %p155 = pneg %p154
      // Predicated region
      $region25: #{tpu_custom_call.1} parent=5 // pred_check
        _
      $region26: #{tpu_custom_call.1} parent=5 // pred_check_branch
        %157 = sbr.rel (%p154) target = $region28
      $region27: #{tpu_custom_call.1} parent=5 // pred_region
        %s158 = ssub.s32 %s17, 1
        %s159 = sand.u32 %s30, 1
        %s160 = scalar_lea.sflag [#allocation3], %s159
        %s161 = sand.u32 %s30, 1
        %s162 = smul.addr %s161, 32
        %s163 = scalar_lea.vmem [#allocation2], %s162
        // Predicated region
        $region29: #{tpu_custom_call.1} parent=27 // pred_check
          %p164 = pneg %p43
        $region30: #{tpu_custom_call.1} parent=27 // pred_check_branch
          %166 = sbr.rel (%p164) target = $region32
        $region31: #{tpu_custom_call.1} parent=27 // pred_region
          %167 = dma.done %s160, 512
        $region32: #{tpu_custom_call.1} parent=27 // pred_fallthru
          _
        %s168 = sand.u32 %s56, 1
        %s169 = scalar_lea.sflag [#allocation6], %s168
        %s170 = sand.u32 %s56, 1
        %s171 = smul.addr %s170, 32
        %s172 = scalar_lea.vmem [#allocation5], %s171
        // Predicated region
        $region33: #{tpu_custom_call.1} parent=27 // pred_check
          %p173 = pneg %p69
        $region34: #{tpu_custom_call.1} parent=27 // pred_check_branch
          %175 = sbr.rel (%p173) target = $region36
        $region35: #{tpu_custom_call.1} parent=27 // pred_region
          %176 = dma.done %s169, 512
        $region36: #{tpu_custom_call.1} parent=27 // pred_fallthru
          _
        %s177 = sand.u32 %s30, 1
        %s178 = scalar_lea.sflag [#allocation3], %s177
        %s179 = sand.u32 %s30, 1
        %s180 = smul.addr %s179, 32
        %s181 = scalar_lea.vmem [#allocation2], %s180
        %p182 = pneg %p43
        %p183 = pneg %p40
        %s184 = sand.u32 %s56, 1
        %s185 = scalar_lea.sflag [#allocation6], %s184
        %s186 = sand.u32 %s56, 1
        %s187 = smul.addr %s186, 32
        %s188 = scalar_lea.vmem [#allocation5], %s187
        %p189 = pneg %p69
        %p190 = pneg %p66
        %p191 = pneg %p95
        %p192 = pneg %p92
        %s193 = sand.u32 %s82, 1
        %s194 = scalar_lea.sflag [#allocation4], %s193
        %s195 = sand.u32 %s82, 1
        %s196 = smul.addr %s195, 32
        %s197 = scalar_lea.vmem [#allocation7], %s196
        %v198 = vld [vmem:[%s163] sm:$0xff]
        %v199 = vld [vmem:[%s163 + $0x8] sm:$0xff]
        %v200 = vld [vmem:[%s163 + $0x10] sm:$0xff]
        %v201 = vld [vmem:[%s163 + $0x18] sm:$0xff]
        %v202 = vld [vmem:[%s172] sm:$0xff]
        %v203 = vld [vmem:[%s172 + $0x8] sm:$0xff]
        %v204 = vld [vmem:[%s172 + $0x10] sm:$0xff]
        %v205 = vld [vmem:[%s172 + $0x18] sm:$0xff]
        %v206 = vsub.f32 %v198, %v202
        %v207 = vsub.f32 %v199, %v203
        %v208 = vsub.f32 %v200, %v204
        %v209 = vsub.f32 %v201, %v205
        %v210 = vand.u32 2147483647, %v206
        %v211 = vand.u32 2147483647, %v207
        %v212 = vand.u32 2147483647, %v208
        %v213 = vand.u32 2147483647, %v209
        %v214 = vmul.f32 %v206, 0.5
        %v215 = vmul.f32 %v207, 0.5
        %v216 = vmul.f32 %v208, 0.5
        %v217 = vmul.f32 %v209, 0.5
        %v218 = vmul.f32 %v214, %v206
        %v219 = vmul.f32 %v215, %v207
        %v220 = vmul.f32 %v216, %v208
        %v221 = vmul.f32 %v217, %v209
        %v222 = vsub.f32 %v210, 0.5
        %v223 = vsub.f32 %v211, 0.5
        %v224 = vsub.f32 %v212, 0.5
        %v225 = vsub.f32 %v213, 0.5
        %vm226 = vcmp.le.f32.partialorder %v210, 1.0
        %vm227 = vcmp.le.f32.partialorder %v211, 1.0
        %vm228 = vcmp.le.f32.partialorder %v212, 1.0
        %vm229 = vcmp.le.f32.partialorder %v213, 1.0
        %v230 = vsel %vm226, %v218, %v222
        %v231 = vsel %vm227, %v219, %v223
        %v232 = vsel %vm228, %v220, %v224
        %v233 = vsel %vm229, %v221, %v225
        %234 = vst [vmem:[%s197] sm:$0xff] %v230
        %235 = vst [vmem:[%s197 + $0x8] sm:$0xff] %v231
        %236 = vst [vmem:[%s197 + $0x10] sm:$0xff] %v232
        %237 = vst [vmem:[%s197 + $0x18] sm:$0xff] %v233
        %s238 = sand.u32 %s82, 1
        %s239 = scalar_lea.sflag [#allocation4], %s238
        %s240 = sand.u32 %s82, 1
        %s241 = smul.addr %s240, 32
        %s242 = scalar_lea.vmem [#allocation7], %s241
        // Predicated region
        $region37: #{tpu_custom_call.1} parent=27 // pred_check
          %p243 = pneg %p92
        $region38: #{tpu_custom_call.1} parent=27 // pred_check_branch
          %245 = sbr.rel (%p243) target = $region40
        $region39: #{tpu_custom_call.1} parent=27 // pred_region
          %s247 = ssub.s32 512, 512
          %248 = vsyncadd %s239, %s247
          %s249 = smul.addr %s22, 4
          %s250 = smul.addr %s249, 128
          %s251 = scalar_lea.hbm %s2, %s250
          %s253 = sshll.u32 %s242, 4
          %s254 = int_to_ptr.vmem [resolvable:$true] %s253
          %256 = dma.vmem_to_hbm [thread:$0]  %s254, 512, %s251, %s239
        $region40: #{tpu_custom_call.1} parent=27 // pred_fallthru
          _
      $region28: #{tpu_custom_call.1} parent=5 // pred_fallthru
        _
      %p257 = scmp.le.s32.totalorder 2, %s17
      // Predicated region
      $region41: #{tpu_custom_call.1} parent=5 // pred_check
        %p258 = pneg %p257
      $region42: #{tpu_custom_call.1} parent=5 // pred_check_branch
        %260 = sbr.rel (%p258) target = $region44
      $region43: #{tpu_custom_call.1} parent=5 // pred_region
        %s261 = ssub.s32 %s17, 2
        // Predicated region
        $region45: #{tpu_custom_call.1} parent=43 // pred_check
          %p262 = pneg %p98
        $region46: #{tpu_custom_call.1} parent=43 // pred_check_branch
          %264 = sbr.rel (%p262) target = $region48
        $region47: #{tpu_custom_call.1} parent=43 // pred_region
          %s265 = sand.u32 %s83, 1
          %s266 = scalar_lea.sflag [#allocation4], %s265
          %s267 = sand.u32 %s83, 1
          %s268 = smul.addr %s267, 32
          %s269 = scalar_lea.vmem [#allocation7], %s268
          %270 = dma.done %s266, 512
        $region48: #{tpu_custom_call.1} parent=43 // pred_fallthru
          _
      $region44: #{tpu_custom_call.1} parent=5 // pred_fallthru
        _
    $region6: #{tpu_custom_call.1} parent=1 // loop_footer
      %s21 = sadd.s32 1, %s17
    $region7: #{tpu_custom_call.1} parent=1 // loop_footer_branch
      %16 = sbr.rel target = $region3
    $region8: #{tpu_custom_call.1} parent=1 // loop_exit
      _
    %271 = vsyncpa [#allocation3], 1
    %s272 = scalar_lea.sflag [#allocation3], 1
    %273 = vsyncpa %s272, 1
    %274 = vsyncpa [#allocation6], 1
    %s275 = scalar_lea.sflag [#allocation6], 1
    %276 = vsyncpa %s275, 1
    %277 = vsyncpa [#allocation4], 1
    %s278 = scalar_lea.sflag [#allocation4], 1
    %279 = vsyncpa %s278, 1

</llo_original>
